<compile_context>
chip_gen: v7x
topology: tpu7x:2x2x1
jax: 0.10.0
libtpu: 0.0.40
codegen_flags: <defaults>
</compile_context>

<pallas_src>
import functools

import jax
import jax.numpy as jnp
from jax import lax
from jax.experimental import pallas as pl
from jax.experimental.pallas import tpu as pltpu

EPS = 1e-5


def _stats_kernel(x_ref, sums_ref, acc_ref, *, tile_rows, valid_rows, mask_tail):
    """Pass 1: per-lane sum and sum-of-squares over all rows (grid = row tiles)."""
    i = pl.program_id(0)

    @pl.when(i == 0)
    def _():
        acc_ref[...] = jnp.zeros_like(acc_ref)

    x = x_ref[...].astype(jnp.float32)
    if mask_tail:
        # Partial last tile: out-of-bounds rows contain garbage -> zero them.
        row = i * tile_rows + lax.broadcasted_iota(jnp.int32, x.shape, 0)
        x = jnp.where(row < valid_rows, x, 0.0)

    acc_ref[0:1, :] += jnp.sum(x, axis=0, keepdims=True)
    acc_ref[1:2, :] += jnp.sum(x * x, axis=0, keepdims=True)

    @pl.when(i == pl.num_programs(0) - 1)
    def _():
        sums_ref[...] = acc_ref[...]


def _norm_kernel(x_ref, scale_ref, shift_ref, o_ref):
    """Pass 2: pure FMA, y = x * scale + shift (scale/shift precomputed)."""
    x = x_ref[...].astype(jnp.float32)
    o_ref[...] = (x * scale_ref[...] + shift_ref[...]).astype(o_ref.dtype)


def _vmem_budget_bytes():
    """Half of physical VMEM (32 MiB on v7x, 64 MiB on v5e/v6e), with fallback."""
    try:
        info = pltpu.get_tpu_info()
        phys = int(getattr(info, "vmem_capacity_bytes"))
    except Exception:
        phys = 64 << 20
    return max(phys // 2, 16 << 20)


def edge_bn(e, gamma, beta):
    """Pallas implementation of EdgeBN.forward.  e: (B, N, N, H)."""
    B, N1, N2, H = e.shape
    if N1 == 1:                     # `if len(e[0]) == 1: return e`
        return e

    M = B * N1 * N2

    # --- lane fold: (M, H) -> (M/k, k*H) so the last dim is 128-lane dense ---
    if H < 128 and 128 % H == 0:
        k = 128 // H
        while k > 1 and M % k:
            k //= 2
    else:
        k = 1
    W = k * H
    rows = M // k
    x = e.reshape(rows, W)          # contiguous reshape: pure view for XLA

    # --- tile-size / VMEM budget selection (generation aware) ---
    budget = _vmem_budget_bytes()
    itemsize = jnp.dtype(e.dtype).itemsize
    target_block = min(2 << 20, budget // 16)        # ~2 MiB per buffer
    tile_rows = max(8, target_block // (W * itemsize))
    tile_rows -= tile_rows % 8                       # sublane alignment
    tile_rows = max(8, tile_rows)
    if tile_rows >= rows:
        tile_rows = rows                             # full-extent block is allowed
        num_tiles = 1
        mask_tail = False
    else:
        num_tiles = pl.cdiv(rows, tile_rows)
        mask_tail = (rows % tile_rows) != 0

    block_bytes = tile_rows * W * itemsize
    vmem_limit = int(min(budget, max(6 * block_bytes + (1 << 20), 16 << 20)))

    # --- pass 1: per-lane sum / sumsq reduction (accumulator in VMEM scratch) ---
    sums = pl.pallas_call(
        functools.partial(_stats_kernel, tile_rows=tile_rows,
                          valid_rows=rows, mask_tail=mask_tail),
        out_shape=jax.ShapeDtypeStruct((2, W), jnp.float32),
        grid_spec=pltpu.PrefetchScalarGridSpec(
            num_scalar_prefetch=0,
            grid=(num_tiles,),
            in_specs=[pl.BlockSpec((tile_rows, W), lambda i: (i, 0))],
            out_specs=pl.BlockSpec((2, W), lambda i: (0, 0)),
            scratch_shapes=[pltpu.VMEM((2, W), jnp.float32)],
        ),
        compiler_params=pltpu.CompilerParams(
            dimension_semantics=("arbitrary",),
            vmem_limit_bytes=vmem_limit),
    )(x)

    # --- tiny host-side (wrapper) math: combine the k lane-groups, build scale/shift ---
    sums_c = sums.reshape(2, k, H).sum(axis=1)       # (2, H): per-channel sum / sumsq
    count = float(M)
    mean = sums_c[0] / count
    var = sums_c[1] / count - mean * mean            # biased variance (BatchNorm)
    inv = lax.rsqrt(var + EPS)
    scale = gamma.astype(jnp.float32) * inv
    shift = beta.astype(jnp.float32) - mean * scale
    scale_w = jnp.tile(scale, (k,)).reshape(1, W)    # lane j*H + c  ->  channel c
    shift_w = jnp.tile(shift, (k,)).reshape(1, W)

    # --- pass 2: lane-dense FMA normalization ---
    y = pl.pallas_call(
        _norm_kernel,
        out_shape=jax.ShapeDtypeStruct((rows, W), e.dtype),
        grid_spec=pltpu.PrefetchScalarGridSpec(
            num_scalar_prefetch=0,
            grid=(num_tiles,),
            in_specs=[
                pl.BlockSpec((tile_rows, W), lambda i: (i, 0)),
                pl.BlockSpec((1, W), lambda i: (0, 0)),
                pl.BlockSpec((1, W), lambda i: (0, 0)),
            ],
            out_specs=pl.BlockSpec((tile_rows, W), lambda i: (i, 0)),
        ),
        compiler_params=pltpu.CompilerParams(
            dimension_semantics=("parallel",),
            vmem_limit_bytes=vmem_limit),
    )(x, scale_w, shift_w)

    return y.reshape(B, N1, N2, H)


def edge_bn_ref(e, gamma, beta):
    """Plain-JAX reference (BatchNorm2d with batch stats, biased var)."""
    x = e.astype(jnp.float32)
    mean = x.mean(axis=(0, 1, 2))
    var = x.var(axis=(0, 1, 2))                 # biased
    y = (x - mean) * lax.rsqrt(var + EPS) * gamma + beta
    return y.astype(e.dtype)


if __name__ == "__main__":
    key = jax.random.PRNGKey(0)
    k_e, k_g, k_b = jax.random.split(key, 3)

    B, N, H = 2, 16, 32                     # e: (batch, nodes, nodes, hidden_dim)
    e = jax.random.normal(k_e, (B, N, N, H), dtype=jnp.float32)
    # Deterministic, non-trivial affine params (shape (H,) per BatchNorm2d init).
    gamma = 1.0 + 0.1 * jax.random.normal(k_g, (H,), dtype=jnp.float32)
    beta = 0.1 * jax.random.normal(k_b, (H,), dtype=jnp.float32)

    out = edge_bn(e, gamma, beta)
    out = jax.block_until_ready(out)

    ref = edge_bn_ref(e, gamma, beta)
    assert out.shape == e.shape and out.dtype == e.dtype
    assert jnp.allclose(out, ref, rtol=1e-4, atol=1e-5), (
        float(jnp.max(jnp.abs(out - ref))))

    print("KERNEL_OK")
</pallas_src>

<mosaic_0001>
module attributes {stable_mosaic.version = 11 : i64} {
  func.func @_stats_kernel(%arg0: i32, %arg1: memref<128x128xf32, #tpu.memory_space<vmem>>, %arg2: memref<2x128xf32, #tpu.memory_space<vmem>>, %arg3: memref<2x128xf32, #tpu.memory_space<vmem>>) attributes {dimension_semantics = [#tpu.dimension_semantics<arbitrary>], iteration_bounds = array<i64: 1>, scalar_prefetch = 0 : i64, scratch_operands = 1 : i64, tpu.core_type = #tpu.core_type<tc>, window_params = [{transform_indices = @transform_0, window_bounds = array<i64: 128, 128>}, {pipeline_mode = #tpu.pipeline_mode<synchronous>, transform_indices = @transform_1, window_bounds = array<i64: 2, 128>}]} {
    %c0_i32 = arith.constant 0 : i32
    %0 = arith.cmpi eq, %arg0, %c0_i32 : i32
    %1 = arith.extui %0 : i1 to i32
    %c0_i32_0 = arith.constant 0 : i32
    %2 = arith.cmpi ne, %1, %c0_i32_0 : i32
    scf.if %2 {
      %cst_12 = arith.constant 0.000000e+00 : f32
      %18 = vector.broadcast %cst_12 : f32 to vector<2x128xf32>
      %c0_13 = arith.constant 0 : index
      %c0_14 = arith.constant 0 : index
      %19 = vector.load %arg3[%c0_13, %c0_14] : memref<2x128xf32, #tpu.memory_space<vmem>>, vector<2x128xf32>
      tpu.vector_store %arg3[%c0_13, %c0_14], %18 {strides = array<i32>} : memref<2x128xf32, #tpu.memory_space<vmem>>, vector<2x128xf32>,
    } else {
    }
    %c0 = arith.constant 0 : index
    %c0_1 = arith.constant 0 : index
    %3 = vector.load %arg1[%c0, %c0_1] : memref<128x128xf32, #tpu.memory_space<vmem>>, vector<128x128xf32>
    %c0_2 = arith.constant 0 : index
    %c0_3 = arith.constant 0 : index
    %4 = vector.load %arg3[%c0_2, %c0_3] : memref<2x128xf32, #tpu.memory_space<vmem>>, vector<1x128xf32>
    %cst = arith.constant dense<0.000000e+00> : vector<128xf32>
    %5 = vector.multi_reduction <add>, %3, %cst [0] : vector<128x128xf32> to vector<128xf32>
    %6 = vector.shape_cast %5 : vector<128xf32> to vector<1x128xf32>
    %7 = arith.addf %4, %6 : vector<1x128xf32>
    %c0_4 = arith.constant 0 : index
    %c0_5 = arith.constant 0 : index
    %8 = vector.load %arg3[%c0_4, %c0_5] : memref<2x128xf32, #tpu.memory_space<vmem>>, vector<1x128xf32>
    tpu.vector_store %arg3[%c0_4, %c0_5], %7 {strides = array<i32>} : memref<2x128xf32, #tpu.memory_space<vmem>>, vector<1x128xf32>,
    %c1 = arith.constant 1 : index
    %c0_6 = arith.constant 0 : index
    %9 = vector.load %arg3[%c1, %c0_6] : memref<2x128xf32, #tpu.memory_space<vmem>>, vector<1x128xf32>
    %10 = arith.mulf %3, %3 : vector<128x128xf32>
    %cst_7 = arith.constant dense<0.000000e+00> : vector<128xf32>
    %11 = vector.multi_reduction <add>, %10, %cst_7 [0] : vector<128x128xf32> to vector<128xf32>
    %12 = vector.shape_cast %11 : vector<128xf32> to vector<1x128xf32>
    %13 = arith.addf %9, %12 : vector<1x128xf32>
    %c1_8 = arith.constant 1 : index
    %c0_9 = arith.constant 0 : index
    %14 = vector.load %arg3[%c1_8, %c0_9] : memref<2x128xf32, #tpu.memory_space<vmem>>, vector<1x128xf32>
    tpu.vector_store %arg3[%c1_8, %c0_9], %13 {strides = array<i32>} : memref<2x128xf32, #tpu.memory_space<vmem>>, vector<1x128xf32>,
    %c0_i32_10 = arith.constant 0 : i32
    %15 = arith.cmpi eq, %arg0, %c0_i32_10 : i32
    %16 = arith.extui %15 : i1 to i32
    %c0_i32_11 = arith.constant 0 : i32
    %17 = arith.cmpi ne, %16, %c0_i32_11 : i32
    scf.if %17 {
      %c0_12 = arith.constant 0 : index
      %c0_13 = arith.constant 0 : index
      %18 = vector.load %arg3[%c0_12, %c0_13] : memref<2x128xf32, #tpu.memory_space<vmem>>, vector<2x128xf32>
      %c0_14 = arith.constant 0 : index
      %c0_15 = arith.constant 0 : index
      %19 = vector.load %arg2[%c0_14, %c0_15] : memref<2x128xf32, #tpu.memory_space<vmem>>, vector<2x128xf32>
      tpu.vector_store %arg2[%c0_14, %c0_15], %18 {strides = array<i32>} : memref<2x128xf32, #tpu.memory_space<vmem>>, vector<2x128xf32>,
    } else {
    }
    return
  }
  func.func @transform_0(%arg0: i32) -> (i32, i32) {
    %c0_i32 = arith.constant 0 : i32
    %c0_i32_0 = arith.constant 0 : i32
    return %arg0, %c0_i32 : i32, i32
  }
  func.func @transform_1(%arg0: i32) -> (i32, i32) {
    %c0_i32 = arith.constant 0 : i32
    %c0_i32_0 = arith.constant 0 : i32
    %c0_i32_1 = arith.constant 0 : i32
    return %c0_i32, %c0_i32_0 : i32, i32
  }
}

</mosaic_0001>

<llo_original>
// kernel: tpu_custom_call.1
$region0: #{tpu_custom_call.1}
  #allocation0 [shape = 'u32[]', space=smem, size = 0x4, offset = 0x4, fixed_abs, tag = 'smem constant byte address 0x4 - core index']
  #allocation1 [shape = 'u32[144,128]{1,0:T(1,128)}', space=vmem, size = 0x12000, scoped, tag = 'internal scratch']
  #allocation2 [shape = 'f32[2,128]{1,0:T(2,128)}', space=vmem, size = 0x400, scoped, tag = 'scratch operand']
  %s0 = inlined_call_operand.hbm [shape: f32[128,128], index: 0, kind: input, shape index: {}]
  %s1 = inlined_call_operand.hbm [shape: f32[2,128], index: 1, kind: output, shape index: {}]
  %s2 = sld [smem:[#allocation0]]
  $region26: #{tpu_custom_call.1} parent=0
    _
  %s4 = ssub.s32 1, %s2
  %s5 = scalar_select 0, %s4, %s2
  $region1: #{tpu_custom_call.1} parent=0
    #allocation3 [shape = 'u8[65536]{0}', space=vmem, size = 0x10000, scoped, tag = 'input window, operand 0, single buffered']
    #allocation4 [shape = 's32[1]{0}', space=sflag, size = 0x4, scoped, tag = 'scoped memory for tpu_custom_call.1']
    #allocation5 [shape = 's32[1]{0}', space=sflag, size = 0x4, scoped, tag = 'scoped memory for tpu_custom_call.1']
    #allocation6 [shape = 'u8[1024]{0}', space=vmem, size = 0x400, scoped, tag = 'output window, operand 0, single buffered']
    %6 = vsyncpa [#allocation4], 0
    %7 = vsyncpa [#allocation5], 0
    // Predicated region
    $region2: #{tpu_custom_call.1} parent=1 // pred_check
      _
    $region3: #{tpu_custom_call.1} parent=1 // pred_check_branch
      %9 = sbr.rel (0) target = $region5
    $region4: #{tpu_custom_call.1} parent=1 // pred_region
      %s11 = ssub.s32 2048, 2048
      %12 = vsyncadd [#allocation4], %s11
      %s13 = sshll.u32 [#allocation3], 4
      %s14 = int_to_ptr.vmem [resolvable:$true] %s13
      %19 = dma.hbm_to_vmem [thread:$0]  %s0, 2048, %s14, [#allocation4], 128, 128, 8
    $region5: #{tpu_custom_call.1} parent=1 // pred_fallthru
      _
    // Predicated region
    $region6: #{tpu_custom_call.1} parent=1 // pred_check
      _
    $region7: #{tpu_custom_call.1} parent=1 // pred_check_branch
      %21 = sbr.rel (0) target = $region9
    $region8: #{tpu_custom_call.1} parent=1 // pred_region
      %22 = dma.done [#allocation4], 2048
    $region9: #{tpu_custom_call.1} parent=1 // pred_fallthru
      _
    %p23 = scmp.eq.s32.totalorder 0, 0
    // Predicated region
    $region10: #{tpu_custom_call.1} parent=1 // pred_check
      %p24 = pneg %p23
    $region11: #{tpu_custom_call.1} parent=1 // pred_check_branch
      %26 = sbr.rel (%p24) target = $region13
    $region12: #{tpu_custom_call.1} parent=1 // pred_region
      %27 = vst [vmem:[#allocation2] sm:$0x3] 0.0
    $region13: #{tpu_custom_call.1} parent=1 // pred_fallthru
      _
    %v28 = vld [vmem:[#allocation3] sm:$0xff]
    %v29 = vld [vmem:[#allocation3 + $0x8] sm:$0xff]
    %v30 = vld [vmem:[#allocation3 + $0x10] sm:$0xff]
    %v31 = vld [vmem:[#allocation3 + $0x18] sm:$0xff]
    %v32 = vld [vmem:[#allocation3 + $0x20] sm:$0xff]
    %v33 = vld [vmem:[#allocation3 + $0x28] sm:$0xff]
    %v34 = vld [vmem:[#allocation3 + $0x30] sm:$0xff]
    %v35 = vld [vmem:[#allocation3 + $0x38] sm:$0xff]
    %v36 = vld [vmem:[#allocation3 + $0x40] sm:$0xff]
    %v37 = vld [vmem:[#allocation3 + $0x48] sm:$0xff]
    %v38 = vld [vmem:[#allocation3 + $0x50] sm:$0xff]
    %v39 = vld [vmem:[#allocation3 + $0x58] sm:$0xff]
    %v40 = vld [vmem:[#allocation3 + $0x60] sm:$0xff]
    %v41 = vld [vmem:[#allocation3 + $0x68] sm:$0xff]
    %v42 = vld [vmem:[#allocation3 + $0x70] sm:$0xff]
    %v43 = vld [vmem:[#allocation3 + $0x78] sm:$0xff]
    %v44 = vld [vmem:[#allocation2] sm:$0x1]
    %v45 = vadd.f32 %v28, %v29
    %v46 = vadd.f32 %v45, %v30
    %v47 = vadd.f32 %v46, %v31
    %v48 = vadd.f32 %v47, %v32
    %v49 = vadd.f32 %v48, %v33
    %v50 = vadd.f32 %v49, %v34
    %v51 = vadd.f32 %v50, %v35
    %v52 = vadd.f32 %v51, %v36
    %v53 = vadd.f32 %v52, %v37
    %v54 = vadd.f32 %v53, %v38
    %v55 = vadd.f32 %v54, %v39
    %v56 = vadd.f32 %v55, %v40
    %v57 = vadd.f32 %v56, %v41
    %v58 = vadd.f32 %v57, %v42
    %v59 = vadd.f32 %v58, %v43
    %v60 = vrot.slane %v59, 4
    %v61 = vadd.f32 %v59, %v60
    %v62 = vrot.slane %v61, 2
    %v63 = vadd.f32 %v61, %v62
    %v64 = vrot.slane %v63, 1
    %v65 = vadd.f32 %v63, %v64
    %v66 = vadd.f32 %v44, %v65
    %67 = vst [vmem:[#allocation2] sm:$0x1] %v66
    %v68 = vld [vmem:[#allocation2 + $0x1] sm:$0x1]
    %v69 = vmul.f32 %v28, %v28
    %v70 = vmul.f32 %v29, %v29
    %v71 = vmul.f32 %v30, %v30
    %v72 = vmul.f32 %v31, %v31
    %v73 = vmul.f32 %v32, %v32
    %v74 = vmul.f32 %v33, %v33
    %v75 = vmul.f32 %v34, %v34
    %v76 = vmul.f32 %v35, %v35
    %v77 = vmul.f32 %v36, %v36
    %v78 = vmul.f32 %v37, %v37
    %v79 = vmul.f32 %v38, %v38
    %v80 = vmul.f32 %v39, %v39
    %v81 = vmul.f32 %v40, %v40
    %v82 = vmul.f32 %v41, %v41
    %v83 = vmul.f32 %v42, %v42
    %v84 = vmul.f32 %v43, %v43
    %v85 = vadd.f32 %v69, %v70
    %v86 = vadd.f32 %v85, %v71
    %v87 = vadd.f32 %v86, %v72
    %v88 = vadd.f32 %v87, %v73
    %v89 = vadd.f32 %v88, %v74
    %v90 = vadd.f32 %v89, %v75
    %v91 = vadd.f32 %v90, %v76
    %v92 = vadd.f32 %v91, %v77
    %v93 = vadd.f32 %v92, %v78
    %v94 = vadd.f32 %v93, %v79
    %v95 = vadd.f32 %v94, %v80
    %v96 = vadd.f32 %v95, %v81
    %v97 = vadd.f32 %v96, %v82
    %v98 = vadd.f32 %v97, %v83
    %v99 = vadd.f32 %v98, %v84
    %v100 = vrot.slane %v99, 4
    %v101 = vadd.f32 %v99, %v100
    %v102 = vrot.slane %v101, 2
    %v103 = vadd.f32 %v101, %v102
    %v104 = vrot.slane %v103, 1
    %v105 = vadd.f32 %v103, %v104
    %v106 = vadd.f32 %v68, %v105
    %107 = vst [vmem:[#allocation2 + $0x1] sm:$0x1] %v106
    // Predicated region
    $region14: #{tpu_custom_call.1} parent=1 // pred_check
      %p108 = pneg %p23
    $region15: #{tpu_custom_call.1} parent=1 // pred_check_branch
      %110 = sbr.rel (%p108) target = $region17
    $region16: #{tpu_custom_call.1} parent=1 // pred_region
      %v111 = vld [vmem:[#allocation2] sm:$0x3]
      %112 = vst [vmem:[#allocation6] sm:$0x3] %v111
    $region17: #{tpu_custom_call.1} parent=1 // pred_fallthru
      _
    // Predicated region
    $region18: #{tpu_custom_call.1} parent=1 // pred_check
      _
    $region19: #{tpu_custom_call.1} parent=1 // pred_check_branch
      %114 = sbr.rel (0) target = $region21
    $region20: #{tpu_custom_call.1} parent=1 // pred_region
      %s116 = ssub.s32 32, 32
      %117 = vsyncadd [#allocation5], %s116
      %s119 = sshll.u32 [#allocation6], 4
      %s120 = int_to_ptr.vmem [resolvable:$true] %s119
      %122 = dma.vmem_to_hbm [thread:$0]  %s120, 32, %s1, [#allocation5]
    $region21: #{tpu_custom_call.1} parent=1 // pred_fallthru
      _
    // Predicated region
    $region22: #{tpu_custom_call.1} parent=1 // pred_check
      _
    $region23: #{tpu_custom_call.1} parent=1 // pred_check_branch
      %124 = sbr.rel (0) target = $region25
    $region24: #{tpu_custom_call.1} parent=1 // pred_region
      %125 = dma.done [#allocation5], 32
    $region25: #{tpu_custom_call.1} parent=1 // pred_fallthru
      _
    %126 = vsyncpa [#allocation4], 1
    %127 = vsyncpa [#allocation5], 1

</llo_original>
